<compile_context>
chip_gen: v5e
topology: v5e:2x2
jax: 0.10.0
libtpu: 0.0.40
codegen_flags: <defaults>
</compile_context>

<pallas_src>
import functools

import jax
import jax.numpy as jnp
import numpy as np
from jax.experimental import pallas as pl
from jax.experimental.pallas import tpu as pltpu


def _chamfer_kernel(out_ref, y_ref, dist_ref, *, n_valid):
    """out_ref, y_ref: (TB, Npad) f32 blocks; dist_ref: (TB, Npad) i32 block."""
    o = out_ref[...]                                             # (TB, Npad)
    yv = y_ref[...]                                              # (TB, Npad)
    _, npad = o.shape

    col = jax.lax.broadcasted_iota(jnp.int32, (1, npad), 1)      # (1, Npad)

    if n_valid == npad:
        # Lane-dense fast path: no masking needed.
        y_for_max, y_for_min = yv, yv
        o_for_max, o_for_min = o, o
    else:
        valid = col < n_valid                                    # (1, Npad)
        y_for_max = jnp.where(valid, yv, float("-inf"))
        y_for_min = jnp.where(valid, yv, float("inf"))
        o_for_max = jnp.where(valid, o, float("-inf"))
        o_for_min = jnp.where(valid, o, float("inf"))

    # Per-row extreme values + first-occurrence indices (XLU row reductions).
    y_max = jnp.max(y_for_max, axis=-1, keepdims=True)           # (TB, 1)
    y_min = jnp.min(y_for_min, axis=-1, keepdims=True)
    y_amax = jnp.min(jnp.where(y_for_max == y_max, col, npad),
                     axis=-1, keepdims=True)
    y_amin = jnp.min(jnp.where(y_for_min == y_min, col, npad),
                     axis=-1, keepdims=True)

    o_max = jnp.max(o_for_max, axis=-1, keepdims=True)
    o_min = jnp.min(o_for_min, axis=-1, keepdims=True)
    o_amax = jnp.min(jnp.where(o_for_max == o_max, col, npad),
                     axis=-1, keepdims=True)
    o_amin = jnp.min(jnp.where(o_for_min == o_min, col, npad),
                     axis=-1, keepdims=True)

    # left[b, i] = argmax_j |y[b, j] - out[b, i]|:
    #   max_j |y_j - c| = max(y_max - c, c - y_min); achieved at y_max when
    #   y_max - c > c - y_min, at y_min when <, first of the two on a tie.
    d_hi = y_max - o                                             # (TB, Npad)
    d_lo = o - y_min
    y_tie = jnp.minimum(y_amax, y_amin)
    left = jnp.where(d_hi > d_lo, y_amax,
                     jnp.where(d_hi < d_lo, y_amin, y_tie))      # i32

    # right[b, j] = argmax_i |y[b, j] - out[b, i]|  (symmetric).  v2 bug fix:
    # when o_max is farther (r_hi > r_lo) the index is o_amax, not o_amin.
    r_hi = o_max - yv
    r_lo = yv - o_min
    o_tie = jnp.minimum(o_amax, o_amin)
    right = jnp.where(r_hi > r_lo, o_amax,
                      jnp.where(r_hi < r_lo, o_amin, o_tie))     # i32

    dist_ref[...] = left + right


def _vmem_limits():
    """Return (scoped vmem limit to request, block-sizing budget) in bytes."""
    cap = 64 * 1024 * 1024                 # conservative default: v7x per-TC
    try:
        info = pltpu.get_tpu_info()
        c = getattr(info, "vmem_capacity_bytes", None)
        if c:
            cap = int(c)
    except Exception:
        pass
    # Request ~75% of physical (leave headroom for Mosaic internals), capped.
    vmem_limit = min(int(cap * 0.75), 96 * 1024 * 1024)
    # Budget for the 2 input + 1 output blocks (double-buffered).
    budget = int(vmem_limit * 0.6)
    return vmem_limit, budget


def _num_tensorcores():
    try:
        info = pltpu.get_tpu_info()
        for attr in ("num_tensorcores", "tensorcore_count", "num_cores",
                     "core_count"):
            v = getattr(info, attr, None)
            if isinstance(v, int) and v > 0:
                return v
    except Exception:
        pass
    return 1


def _pick_tb(b, n_padded, budget_bytes, num_cores):
    """Largest sublane-aligned batch tile whose double-buffered working set
    (2 inputs + 1 output, 4 B/elem -> 24 * TB * Npad bytes) fits the budget."""
    bytes_per_row = 24 * n_padded
    tb_max = (budget_bytes // bytes_per_row) // 8 * 8
    if tb_max < 8:
        # TODO(synk): stream over a second "arbitrary" grid axis on N instead.
        tb_max = 8
    if tb_max >= b:
        # Whole batch fits in one block.  Only split for megacore (v7x, 2 TCs)
        # and only when each half-block stays large (>= ~512 KiB).
        if num_cores >= 2:
            half = -(-b // 2)
            half = -(-half // 8) * 8
            if half < b and 12 * half * n_padded >= 512 * 1024:
                return half
        return b
    return tb_max


def chamfer_dist(outputs, y):
    """outputs, y: (B, N) float32 -> (B, N) int32 (left_argmax + right_argmax)."""
    assert outputs.shape == y.shape and outputs.ndim == 2
    B, N = outputs.shape

    n_pad = max(128, -(-N // 128) * 128)          # lane-dense block width
    vmem_limit, budget = _vmem_limits()
    TB = _pick_tb(B, n_pad, budget, _num_tensorcores())
    grid = (pl.cdiv(B, TB),)

    kernel = functools.partial(_chamfer_kernel, n_valid=N)
    return pl.pallas_call(
        kernel,
        out_shape=jax.ShapeDtypeStruct((B, N), jnp.int32),
        grid=grid,
        in_specs=[
            pl.BlockSpec((TB, n_pad), lambda b: (b, 0)),
            pl.BlockSpec((TB, n_pad), lambda b: (b, 0)),
        ],
        out_specs=pl.BlockSpec((TB, n_pad), lambda b: (b, 0)),
        compiler_params=pltpu.CompilerParams(
            dimension_semantics=("parallel",),
            vmem_limit_bytes=vmem_limit,
        ),
    )(outputs, y)


def _reference(outputs, y):
    # Pure-JAX O(N^2) reference of the same semantics.
    diff = jnp.abs(y[:, None, :] - outputs[:, :, None])   # (B, N, N)
    left = jnp.argmax(diff, axis=-1)
    right = jnp.argmax(diff, axis=-2)
    return (left + right).astype(jnp.int32)


if __name__ == "__main__":
    key = jax.random.PRNGKey(0)
    k1, k2, k3, k4, k5, k6 = jax.random.split(key, 6)

    # Case 1: aligned shapes -> single large lane-dense block.
    B, N = 16, 128
    outputs = jax.random.normal(k1, (B, N), dtype=jnp.float32)
    y = jax.random.normal(k2, (B, N), dtype=jnp.float32)
    dist = jax.block_until_ready(chamfer_dist(outputs, y))
    np.testing.assert_array_equal(np.asarray(dist),
                                  np.asarray(_reference(outputs, y)))

    # Case 2: tiny batch -> full-dim sublane block, no wrapper padding.
    B2, N2 = 2, 128
    outputs2 = jax.random.normal(k3, (B2, N2), dtype=jnp.float32)
    y2 = jax.random.normal(k4, (B2, N2), dtype=jnp.float32)
    dist2 = jax.block_until_ready(chamfer_dist(outputs2, y2))
    np.testing.assert_array_equal(np.asarray(dist2),
                                  np.asarray(_reference(outputs2, y2)))

    # Case 3: N not a multiple of 128 -> padded lane block + in-kernel mask.
    B3, N3 = 4, 100
    outputs3 = jax.random.normal(k5, (B3, N3), dtype=jnp.float32)
    y3 = jax.random.normal(k6, (B3, N3), dtype=jnp.float32)
    dist3 = jax.block_until_ready(chamfer_dist(outputs3, y3))
    np.testing.assert_array_equal(np.asarray(dist3),
                                  np.asarray(_reference(outputs3, y3)))

    print("KERNEL_OK")
</pallas_src>

<mosaic_0001>
module attributes {stable_mosaic.version = 11 : i64} {
  func.func @_chamfer_kernel(%arg0: i32, %arg1: memref<16x128xf32, #tpu.memory_space<vmem>>, %arg2: memref<16x128xf32, #tpu.memory_space<vmem>>, %arg3: memref<16x128xi32, #tpu.memory_space<vmem>>) attributes {dimension_semantics = [#tpu.dimension_semantics<parallel>], iteration_bounds = array<i64: 1>, scalar_prefetch = 0 : i64, scratch_operands = 0 : i64, tpu.core_type = #tpu.core_type<tc>, window_params = [{transform_indices = @transform_0, window_bounds = array<i64: 16, 128>}, {transform_indices = @transform_1, window_bounds = array<i64: 16, 128>}, {transform_indices = @transform_2, window_bounds = array<i64: 16, 128>}]} {
    %c0 = arith.constant 0 : index
    %c0_0 = arith.constant 0 : index
    %0 = vector.load %arg1[%c0, %c0_0] : memref<16x128xf32, #tpu.memory_space<vmem>>, vector<16x128xf32>
    %c0_1 = arith.constant 0 : index
    %c0_2 = arith.constant 0 : index
    %1 = vector.load %arg2[%c0_1, %c0_2] : memref<16x128xf32, #tpu.memory_space<vmem>>, vector<16x128xf32>
    %2 = tpu.iota {dimensions = array<i32: 1>} : vector<1x128xi32>
    %cst = arith.constant dense<0xFF800000> : vector<16xf32>
    %3 = vector.multi_reduction <maximumf>, %1, %cst [1] : vector<16x128xf32> to vector<16xf32>
    %4 = vector.shape_cast %3 : vector<16xf32> to vector<16x1xf32>
    %cst_3 = arith.constant dense<0x7F800000> : vector<16xf32>
    %5 = vector.multi_reduction <minimumf>, %1, %cst_3 [1] : vector<16x128xf32> to vector<16xf32>
    %6 = vector.shape_cast %5 : vector<16xf32> to vector<16x1xf32>
    %7 = vector.broadcast %4 : vector<16x1xf32> to vector<16x128xf32>
    %8 = arith.cmpf oeq, %1, %7 : vector<16x128xf32>
    %c128_i32 = arith.constant 128 : i32
    %9 = vector.shape_cast %2 : vector<1x128xi32> to vector<1x128xi32>
    %10 = vector.broadcast %9 : vector<1x128xi32> to vector<16x128xi32>
    %11 = vector.broadcast %c128_i32 : i32 to vector<16x128xi32>
    %12 = arith.select %8, %10, %11 : vector<16x128xi1>, vector<16x128xi32>
    %cst_4 = arith.constant dense<2147483647> : vector<16xi32>
    %13 = vector.multi_reduction <minsi>, %12, %cst_4 [1] : vector<16x128xi32> to vector<16xi32>
    %14 = vector.shape_cast %13 : vector<16xi32> to vector<16x1xi32>
    %15 = vector.broadcast %6 : vector<16x1xf32> to vector<16x128xf32>
    %16 = arith.cmpf oeq, %1, %15 : vector<16x128xf32>
    %c128_i32_5 = arith.constant 128 : i32
    %17 = vector.shape_cast %2 : vector<1x128xi32> to vector<1x128xi32>
    %18 = vector.broadcast %17 : vector<1x128xi32> to vector<16x128xi32>
    %19 = vector.broadcast %c128_i32_5 : i32 to vector<16x128xi32>
    %20 = arith.select %16, %18, %19 : vector<16x128xi1>, vector<16x128xi32>
    %cst_6 = arith.constant dense<2147483647> : vector<16xi32>
    %21 = vector.multi_reduction <minsi>, %20, %cst_6 [1] : vector<16x128xi32> to vector<16xi32>
    %22 = vector.shape_cast %21 : vector<16xi32> to vector<16x1xi32>
    %cst_7 = arith.constant dense<0xFF800000> : vector<16xf32>
    %23 = vector.multi_reduction <maximumf>, %0, %cst_7 [1] : vector<16x128xf32> to vector<16xf32>
    %24 = vector.shape_cast %23 : vector<16xf32> to vector<16x1xf32>
    %cst_8 = arith.constant dense<0x7F800000> : vector<16xf32>
    %25 = vector.multi_reduction <minimumf>, %0, %cst_8 [1] : vector<16x128xf32> to vector<16xf32>
    %26 = vector.shape_cast %25 : vector<16xf32> to vector<16x1xf32>
    %27 = vector.broadcast %24 : vector<16x1xf32> to vector<16x128xf32>
    %28 = arith.cmpf oeq, %0, %27 : vector<16x128xf32>
    %c128_i32_9 = arith.constant 128 : i32
    %29 = vector.shape_cast %2 : vector<1x128xi32> to vector<1x128xi32>
    %30 = vector.broadcast %29 : vector<1x128xi32> to vector<16x128xi32>
    %31 = vector.broadcast %c128_i32_9 : i32 to vector<16x128xi32>
    %32 = arith.select %28, %30, %31 : vector<16x128xi1>, vector<16x128xi32>
    %cst_10 = arith.constant dense<2147483647> : vector<16xi32>
    %33 = vector.multi_reduction <minsi>, %32, %cst_10 [1] : vector<16x128xi32> to vector<16xi32>
    %34 = vector.shape_cast %33 : vector<16xi32> to vector<16x1xi32>
    %35 = vector.broadcast %26 : vector<16x1xf32> to vector<16x128xf32>
    %36 = arith.cmpf oeq, %0, %35 : vector<16x128xf32>
    %c128_i32_11 = arith.constant 128 : i32
    %37 = vector.shape_cast %2 : vector<1x128xi32> to vector<1x128xi32>
    %38 = vector.broadcast %37 : vector<1x128xi32> to vector<16x128xi32>
    %39 = vector.broadcast %c128_i32_11 : i32 to vector<16x128xi32>
    %40 = arith.select %36, %38, %39 : vector<16x128xi1>, vector<16x128xi32>
    %cst_12 = arith.constant dense<2147483647> : vector<16xi32>
    %41 = vector.multi_reduction <minsi>, %40, %cst_12 [1] : vector<16x128xi32> to vector<16xi32>
    %42 = vector.shape_cast %41 : vector<16xi32> to vector<16x1xi32>
    %43 = vector.broadcast %4 : vector<16x1xf32> to vector<16x128xf32>
    %44 = arith.subf %43, %0 : vector<16x128xf32>
    %45 = vector.broadcast %6 : vector<16x1xf32> to vector<16x128xf32>
    %46 = arith.subf %0, %45 : vector<16x128xf32>
    %47 = arith.minsi %14, %22 : vector<16x1xi32>
    %48 = arith.cmpf ogt, %44, %46 : vector<16x128xf32>
    %49 = arith.cmpf olt, %44, %46 : vector<16x128xf32>
    %50 = vector.shape_cast %22 : vector<16x1xi32> to vector<16x1xi32>
    %51 = vector.broadcast %50 : vector<16x1xi32> to vector<16x128xi32>
    %52 = vector.shape_cast %47 : vector<16x1xi32> to vector<16x1xi32>
    %53 = vector.broadcast %52 : vector<16x1xi32> to vector<16x128xi32>
    %54 = arith.select %49, %51, %53 : vector<16x128xi1>, vector<16x128xi32>
    %55 = vector.shape_cast %14 : vector<16x1xi32> to vector<16x1xi32>
    %56 = vector.broadcast %55 : vector<16x1xi32> to vector<16x128xi32>
    %57 = arith.select %48, %56, %54 : vector<16x128xi1>, vector<16x128xi32>
    %58 = vector.broadcast %24 : vector<16x1xf32> to vector<16x128xf32>
    %59 = arith.subf %58, %1 : vector<16x128xf32>
    %60 = vector.broadcast %26 : vector<16x1xf32> to vector<16x128xf32>
    %61 = arith.subf %1, %60 : vector<16x128xf32>
    %62 = arith.minsi %34, %42 : vector<16x1xi32>
    %63 = arith.cmpf ogt, %59, %61 : vector<16x128xf32>
    %64 = arith.cmpf olt, %59, %61 : vector<16x128xf32>
    %65 = vector.shape_cast %42 : vector<16x1xi32> to vector<16x1xi32>
    %66 = vector.broadcast %65 : vector<16x1xi32> to vector<16x128xi32>
    %67 = vector.shape_cast %62 : vector<16x1xi32> to vector<16x1xi32>
    %68 = vector.broadcast %67 : vector<16x1xi32> to vector<16x128xi32>
    %69 = arith.select %64, %66, %68 : vector<16x128xi1>, vector<16x128xi32>
    %70 = vector.shape_cast %34 : vector<16x1xi32> to vector<16x1xi32>
    %71 = vector.broadcast %70 : vector<16x1xi32> to vector<16x128xi32>
    %72 = arith.select %63, %71, %69 : vector<16x128xi1>, vector<16x128xi32>
    %73 = arith.addi %57, %72 : vector<16x128xi32>
    %c0_13 = arith.constant 0 : index
    %c0_14 = arith.constant 0 : index
    %74 = vector.load %arg3[%c0_13, %c0_14] : memref<16x128xi32, #tpu.memory_space<vmem>>, vector<16x128xi32>
    tpu.vector_store %arg3[%c0_13, %c0_14], %73 {strides = array<i32>} : memref<16x128xi32, #tpu.memory_space<vmem>>, vector<16x128xi32>,
    return
  }
  func.func @transform_0(%arg0: i32) -> (i32, i32) {
    %c0_i32 = arith.constant 0 : i32
    %c0_i32_0 = arith.constant 0 : i32
    return %arg0, %c0_i32 : i32, i32
  }
  func.func @transform_1(%arg0: i32) -> (i32, i32) {
    %c0_i32 = arith.constant 0 : i32
    %c0_i32_0 = arith.constant 0 : i32
    return %arg0, %c0_i32 : i32, i32
  }
  func.func @transform_2(%arg0: i32) -> (i32, i32) {
    %c0_i32 = arith.constant 0 : i32
    %c0_i32_0 = arith.constant 0 : i32
    return %arg0, %c0_i32 : i32, i32
  }
}

</mosaic_0001>

<llo_original>
// kernel: tpu_custom_call.1
$region0: #{tpu_custom_call.1}
  #allocation0 [shape = 'u32[]', space=smem, size = 0x4, offset = 0x4, fixed_abs, tag = 'smem constant byte address 0x4 - core index']
  #allocation1 [shape = 'u32[72,128]{1,0:T(1,128)}', space=vmem, size = 0x9000, scoped, tag = 'internal scratch']
  %s0 = inlined_call_operand.hbm [shape: f32[16,128], index: 0, kind: input, shape index: {}]
  %s1 = inlined_call_operand.hbm [shape: f32[16,128], index: 1, kind: input, shape index: {}]
  %s2 = inlined_call_operand.hbm [shape: s32[16,128], index: 2, kind: output, shape index: {}]
  %s3 = sld [smem:[#allocation0]]
  $region26: #{tpu_custom_call.1} parent=0
    _
  %s5 = ssub.s32 1, %s3
  %s6 = scalar_select 0, %s5, %s3
  $region1: #{tpu_custom_call.1} parent=0
    #allocation2 [shape = 'u8[8192]{0}', space=vmem, size = 0x2000, scoped, tag = 'input window, operand 0, single buffered']
    #allocation3 [shape = 's32[1]{0}', space=sflag, size = 0x4, scoped, tag = 'scoped memory for tpu_custom_call.1']
    #allocation4 [shape = 's32[1]{0}', space=sflag, size = 0x4, scoped, tag = 'scoped memory for tpu_custom_call.1']
    #allocation5 [shape = 'u8[8192]{0}', space=vmem, size = 0x2000, scoped, tag = 'input window, operand 1, single buffered']
    #allocation6 [shape = 's32[1]{0}', space=sflag, size = 0x4, scoped, tag = 'scoped memory for tpu_custom_call.1']
    #allocation7 [shape = 'u8[8192]{0}', space=vmem, size = 0x2000, scoped, tag = 'output window, operand 0, single buffered']
    %7 = vsyncpa [#allocation3], 0
    %8 = vsyncpa [#allocation6], 0
    %9 = vsyncpa [#allocation4], 0
    // Predicated region
    $region2: #{tpu_custom_call.1} parent=1 // pred_check
      _
    $region3: #{tpu_custom_call.1} parent=1 // pred_check_branch
      %11 = sbr.rel (0) target = $region5
    $region4: #{tpu_custom_call.1} parent=1 // pred_region
      %13 = vsyncadd [#allocation3], 0
      %s14 = sshll.u32 %s0, 4
      %s15 = int_to_ptr.hbm [resolvable:$true] %s14
      %s16 = sshll.u32 [#allocation2], 4
      %s17 = int_to_ptr.vmem [resolvable:$true] %s16
      %22 = dma.hbm_to_vmem [thread:$0]  %s15, 256, %s17, [#allocation3], 128, 128, 8
    $region5: #{tpu_custom_call.1} parent=1 // pred_fallthru
      _
    // Predicated region
    $region6: #{tpu_custom_call.1} parent=1 // pred_check
      _
    $region7: #{tpu_custom_call.1} parent=1 // pred_check_branch
      %24 = sbr.rel (0) target = $region9
    $region8: #{tpu_custom_call.1} parent=1 // pred_region
      %26 = vsyncadd [#allocation6], 0
      %s27 = sshll.u32 %s1, 4
      %s28 = int_to_ptr.hbm [resolvable:$true] %s27
      %s29 = sshll.u32 [#allocation5], 4
      %s30 = int_to_ptr.vmem [resolvable:$true] %s29
      %35 = dma.hbm_to_vmem [thread:$0]  %s28, 256, %s30, [#allocation6], 128, 128, 8
    $region9: #{tpu_custom_call.1} parent=1 // pred_fallthru
      _
    // Predicated region
    $region10: #{tpu_custom_call.1} parent=1 // pred_check
      _
    $region11: #{tpu_custom_call.1} parent=1 // pred_check_branch
      %37 = sbr.rel (0) target = $region13
    $region12: #{tpu_custom_call.1} parent=1 // pred_region
      %39 = dma.done [#allocation3], 256
    $region13: #{tpu_custom_call.1} parent=1 // pred_fallthru
      _
    // Predicated region
    $region14: #{tpu_custom_call.1} parent=1 // pred_check
      _
    $region15: #{tpu_custom_call.1} parent=1 // pred_check_branch
      %41 = sbr.rel (0) target = $region17
    $region16: #{tpu_custom_call.1} parent=1 // pred_region
      %43 = dma.done [#allocation6], 256
    $region17: #{tpu_custom_call.1} parent=1 // pred_fallthru
      _
    %v44 = vld [vmem:[#allocation2] sm:$0xff]
    %v45 = vld [vmem:[#allocation2 + $0x8] sm:$0xff]
    %v46 = vld [vmem:[#allocation5] sm:$0xff]
    %v47 = vld [vmem:[#allocation5 + $0x8] sm:$0xff]
    %v48 = vlaneseq
    %v49 = vand.u32 %v48, 127
    %50 = vmax.xlane.f32.xlu0 %v46
    %v51 = vpop.xlane.xlu0 %50
    %52 = vmax.xlane.f32.xlu0 %v47
    %v53 = vpop.xlane.xlu0 %52
    %54 = vmin.xlane.f32.xlu0 %v46
    %v55 = vpop.xlane.xlu0 %54
    %56 = vmin.xlane.f32.xlu0 %v47
    %v57 = vpop.xlane.xlu0 %56
    %vm58 = vcmp.eq.f32.partialorder %v46, %v51
    %vm59 = vcmp.eq.f32.partialorder %v47, %v53
    %v60 = vsel %vm58, %v49, 128
    %v61 = vsel %vm59, %v49, 128
    %v62 = vand.u32 %v60, 65535
    %v63 = vshra.s32 %v60, 16
    %v64 = vcvt.s32.f32 %v62
    %v65 = vcvt.s32.f32 %v63
    %66 = vmin.xlane.f32.xlu0 %v65
    %v67 = vpop.xlane.xlu0 %66
    %vm68 = vcmp.eq.f32.partialorder %v65, %v67
    %v69 = vsel %vm68, %v64, inf
    %70 = vmin.xlane.f32.xlu0 %v69
    %v71 = vpop.xlane.xlu0 %70
    %v72 = vcvt.f32.s32 %v71
    %v73 = vcvt.f32.s32 %v67
    %v74 = vshll.u32 %v73, 16
    %v75 = vadd.s32 %v74, %v72
    %v76 = vand.u32 %v61, 65535
    %v77 = vshra.s32 %v61, 16
    %v78 = vcvt.s32.f32 %v76
    %v79 = vcvt.s32.f32 %v77
    %80 = vmin.xlane.f32.xlu0 %v79
    %v81 = vpop.xlane.xlu0 %80
    %vm82 = vcmp.eq.f32.partialorder %v79, %v81
    %v83 = vsel %vm82, %v78, inf
    %84 = vmin.xlane.f32.xlu0 %v83
    %v85 = vpop.xlane.xlu0 %84
    %v86 = vcvt.f32.s32 %v85
    %v87 = vcvt.f32.s32 %v81
    %v88 = vshll.u32 %v87, 16
    %v89 = vadd.s32 %v88, %v86
    %vm90 = vcmp.eq.f32.partialorder %v46, %v55
    %vm91 = vcmp.eq.f32.partialorder %v47, %v57
    %v92 = vsel %vm90, %v49, 128
    %v93 = vsel %vm91, %v49, 128
    %v94 = vand.u32 %v92, 65535
    %v95 = vshra.s32 %v92, 16
    %v96 = vcvt.s32.f32 %v94
    %v97 = vcvt.s32.f32 %v95
    %98 = vmin.xlane.f32.xlu0 %v97
    %v99 = vpop.xlane.xlu0 %98
    %vm100 = vcmp.eq.f32.partialorder %v97, %v99
    %v101 = vsel %vm100, %v96, inf
    %102 = vmin.xlane.f32.xlu0 %v101
    %v103 = vpop.xlane.xlu0 %102
    %v104 = vcvt.f32.s32 %v103
    %v105 = vcvt.f32.s32 %v99
    %v106 = vshll.u32 %v105, 16
    %v107 = vadd.s32 %v106, %v104
    %v108 = vand.u32 %v93, 65535
    %v109 = vshra.s32 %v93, 16
    %v110 = vcvt.s32.f32 %v108
    %v111 = vcvt.s32.f32 %v109
    %112 = vmin.xlane.f32.xlu0 %v111
    %v113 = vpop.xlane.xlu0 %112
    %vm114 = vcmp.eq.f32.partialorder %v111, %v113
    %v115 = vsel %vm114, %v110, inf
    %116 = vmin.xlane.f32.xlu0 %v115
    %v117 = vpop.xlane.xlu0 %116
    %v118 = vcvt.f32.s32 %v117
    %v119 = vcvt.f32.s32 %v113
    %v120 = vshll.u32 %v119, 16
    %v121 = vadd.s32 %v120, %v118
    %122 = vmax.xlane.f32.xlu0 %v44
    %v123 = vpop.xlane.xlu0 %122
    %124 = vmax.xlane.f32.xlu0 %v45
    %v125 = vpop.xlane.xlu0 %124
    %126 = vmin.xlane.f32.xlu0 %v44
    %v127 = vpop.xlane.xlu0 %126
    %128 = vmin.xlane.f32.xlu0 %v45
    %v129 = vpop.xlane.xlu0 %128
    %vm130 = vcmp.eq.f32.partialorder %v44, %v123
    %vm131 = vcmp.eq.f32.partialorder %v45, %v125
    %v132 = vsel %vm130, %v49, 128
    %v133 = vsel %vm131, %v49, 128
    %v134 = vand.u32 %v132, 65535
    %v135 = vshra.s32 %v132, 16
    %v136 = vcvt.s32.f32 %v134
    %v137 = vcvt.s32.f32 %v135
    %138 = vmin.xlane.f32.xlu0 %v137
    %v139 = vpop.xlane.xlu0 %138
    %vm140 = vcmp.eq.f32.partialorder %v137, %v139
    %v141 = vsel %vm140, %v136, inf
    %142 = vmin.xlane.f32.xlu0 %v141
    %v143 = vpop.xlane.xlu0 %142
    %v144 = vcvt.f32.s32 %v143
    %v145 = vcvt.f32.s32 %v139
    %v146 = vshll.u32 %v145, 16
    %v147 = vadd.s32 %v146, %v144
    %v148 = vand.u32 %v133, 65535
    %v149 = vshra.s32 %v133, 16
    %v150 = vcvt.s32.f32 %v148
    %v151 = vcvt.s32.f32 %v149
    %152 = vmin.xlane.f32.xlu0 %v151
    %v153 = vpop.xlane.xlu0 %152
    %vm154 = vcmp.eq.f32.partialorder %v151, %v153
    %v155 = vsel %vm154, %v150, inf
    %156 = vmin.xlane.f32.xlu0 %v155
    %v157 = vpop.xlane.xlu0 %156
    %v158 = vcvt.f32.s32 %v157
    %v159 = vcvt.f32.s32 %v153
    %v160 = vshll.u32 %v159, 16
    %v161 = vadd.s32 %v160, %v158
    %vm162 = vcmp.eq.f32.partialorder %v44, %v127
    %vm163 = vcmp.eq.f32.partialorder %v45, %v129
    %v164 = vsel %vm162, %v49, 128
    %v165 = vsel %vm163, %v49, 128
    %v166 = vand.u32 %v164, 65535
    %v167 = vshra.s32 %v164, 16
    %v168 = vcvt.s32.f32 %v166
    %v169 = vcvt.s32.f32 %v167
    %170 = vmin.xlane.f32.xlu0 %v169
    %v171 = vpop.xlane.xlu0 %170
    %vm172 = vcmp.eq.f32.partialorder %v169, %v171
    %v173 = vsel %vm172, %v168, inf
    %174 = vmin.xlane.f32.xlu0 %v173
    %v175 = vpop.xlane.xlu0 %174
    %v176 = vcvt.f32.s32 %v175
    %v177 = vcvt.f32.s32 %v171
    %v178 = vshll.u32 %v177, 16
    %v179 = vadd.s32 %v178, %v176
    %v180 = vand.u32 %v165, 65535
    %v181 = vshra.s32 %v165, 16
    %v182 = vcvt.s32.f32 %v180
    %v183 = vcvt.s32.f32 %v181
    %184 = vmin.xlane.f32.xlu0 %v183
    %v185 = vpop.xlane.xlu0 %184
    %vm186 = vcmp.eq.f32.partialorder %v183, %v185
    %v187 = vsel %vm186, %v182, inf
    %188 = vmin.xlane.f32.xlu0 %v187
    %v189 = vpop.xlane.xlu0 %188
    %v190 = vcvt.f32.s32 %v189
    %v191 = vcvt.f32.s32 %v185
    %v192 = vshll.u32 %v191, 16
    %v193 = vadd.s32 %v192, %v190
    %v194 = vsub.f32 %v51, %v44
    %v195 = vsub.f32 %v53, %v45
    %v196 = vsub.f32 %v44, %v55
    %v197 = vsub.f32 %v45, %v57
    %vm198 = vcmp.lt.s32.totalorder %v75, %v107
    %v199 = vsel %vm198, %v75, %v107
    %vm200 = vcmp.lt.s32.totalorder %v89, %v121
    %v201 = vsel %vm200, %v89, %v121
    %vm202 = vcmp.gt.f32.partialorder %v194, %v196
    %vm203 = vcmp.gt.f32.partialorder %v195, %v197
    %vm204 = vcmp.lt.f32.partialorder %v194, %v196
    %vm205 = vcmp.lt.f32.partialorder %v195, %v197
    %v206 = vsel %vm204, %v107, %v199
    %v207 = vsel %vm205, %v121, %v201
    %v208 = vsel %vm202, %v75, %v206
    %v209 = vsel %vm203, %v89, %v207
    %v210 = vsub.f32 %v123, %v46
    %v211 = vsub.f32 %v125, %v47
    %v212 = vsub.f32 %v46, %v127
    %v213 = vsub.f32 %v47, %v129
    %vm214 = vcmp.lt.s32.totalorder %v147, %v179
    %v215 = vsel %vm214, %v147, %v179
    %vm216 = vcmp.lt.s32.totalorder %v161, %v193
    %v217 = vsel %vm216, %v161, %v193
    %vm218 = vcmp.gt.f32.partialorder %v210, %v212
    %vm219 = vcmp.gt.f32.partialorder %v211, %v213
    %vm220 = vcmp.lt.f32.partialorder %v210, %v212
    %vm221 = vcmp.lt.f32.partialorder %v211, %v213
    %v222 = vsel %vm220, %v179, %v215
    %v223 = vsel %vm221, %v193, %v217
    %v224 = vsel %vm218, %v147, %v222
    %v225 = vsel %vm219, %v161, %v223
    %v226 = vadd.s32 %v208, %v224
    %v227 = vadd.s32 %v209, %v225
    %228 = vst [vmem:[#allocation7] sm:$0xff] %v226
    %229 = vst [vmem:[#allocation7 + $0x8] sm:$0xff] %v227
    // Predicated region
    $region18: #{tpu_custom_call.1} parent=1 // pred_check
      _
    $region19: #{tpu_custom_call.1} parent=1 // pred_check_branch
      %231 = sbr.rel (0) target = $region21
    $region20: #{tpu_custom_call.1} parent=1 // pred_region
      %233 = vsyncadd [#allocation4], 0
      %s234 = sshll.u32 [#allocation7], 4
      %s235 = int_to_ptr.vmem [resolvable:$true] %s234
      %s236 = sshll.u32 %s2, 4
      %s237 = int_to_ptr.hbm [resolvable:$true] %s236
      %242 = dma.vmem_to_hbm [thread:$0]  %s235, 256, %s237, [#allocation4], 128, 128, 8
    $region21: #{tpu_custom_call.1} parent=1 // pred_fallthru
      _
    // Predicated region
    $region22: #{tpu_custom_call.1} parent=1 // pred_check
      _
    $region23: #{tpu_custom_call.1} parent=1 // pred_check_branch
      %244 = sbr.rel (0) target = $region25
    $region24: #{tpu_custom_call.1} parent=1 // pred_region
      %246 = dma.done [#allocation4], 256
    $region25: #{tpu_custom_call.1} parent=1 // pred_fallthru
      _
    %247 = vsyncpa [#allocation3], 1
    %248 = vsyncpa [#allocation6], 1
    %249 = vsyncpa [#allocation4], 1

</llo_original>
